<compile_context>
chip_gen: v7x
topology: tpu7x:2x2x1
jax: 0.10.0
libtpu: 0.0.40
codegen_flags: <defaults>
</compile_context>

<pallas_src>
import jax
import jax.numpy as jnp
import numpy as np
from jax import lax
from jax.experimental import pallas as pl
from jax.experimental.pallas import tpu as pltpu

KSIZE = 5
PAD = 1
EPS = 1e-5


def _elu(x):
    # ELU(alpha=1); exp only on the clamped negative branch (no inf in dead branch).
    return jnp.where(x > 0, x, jnp.exp(jnp.minimum(x, 0.0)) - 1.0)


def basic_block5x5_kernel(x_ref, w1_ref, b1_ref, w2_ref, b2_ref, o_ref):
    Bt, C, L = x_ref.shape
    L2 = L - 4                        # final output length (two k=5 / pad=1 convs)
    cdt = w1_ref.dtype                # MXU operand dtype (bf16 by default)

    b1 = b1_ref[...]                  # (C, 1) f32 folded BN1 bias
    b2 = b2_ref[...]                  # (C, 1) f32 folded BN2 bias
    zcol = jnp.zeros((C, 1), cdt)

    def conv5(vpad, w_ref):
        # vpad: (C, M + 2) zero-padded activation in compute dtype.
        # Five accumulating MXU dots against tap-major (K, C, C) weights
        # (BN scale already folded in); f32 accumulation; no im2col materialized.
        m_out = vpad.shape[1] - 4     # valid conv output length (M - 2)
        acc = jnp.dot(w_ref[0], vpad[:, 0:m_out],
                      preferred_element_type=jnp.float32)
        for k in range(1, KSIZE):
            acc = acc + jnp.dot(w_ref[k], vpad[:, k:k + m_out],
                                preferred_element_type=jnp.float32)
        return acc

    def one_sample(b):
        xb = x_ref[b].astype(jnp.float32)                   # (C, L) residual (f32)
        xc = xb.astype(cdt)                                  # cast BEFORE padding
        xpad = jnp.concatenate([zcol, xc, zcol], axis=1)     # (C, L + 2)
        y1 = conv5(xpad, w1_ref)                             # (C, L-2)  conv1 * bn1-scale
        a1 = _elu(y1 + b1).astype(cdt)                       # BN1 bias + ELU
        a1pad = jnp.concatenate([zcol, a1, zcol], axis=1)    # (C, L)
        y2 = conv5(a1pad, w2_ref)                            # (C, L-4)  conv2 * bn2-scale
        out = _elu(xb[:, :L2] + (y2 + b2))                   # BN2 bias + residual + ELU
        o_ref[b] = out.astype(o_ref.dtype)

    if Bt == 1:
        one_sample(0)
    else:
        def body(b, carry):
            one_sample(b)
            return carry
        lax.fori_loop(0, Bt, body, 0, unroll=True)


def _vmem_capacity_bytes():
    try:
        info = pltpu.get_tpu_info()
        cap = getattr(info, "vmem_capacity_bytes", None)
        if cap:
            return int(cap)
    except Exception:
        pass
    return 64 * 1024 * 1024           # v7x per-core capacity: most restrictive gen


def _pick_block_batch(N, C, L, x_itemsize, out_itemsize, cdt_itemsize, vmem_budget):
    """How many samples to fold into one grid step (VMEM-budgeted)."""
    def step_bytes(bt):
        io = 2 * bt * C * (L * x_itemsize + (L - 4) * out_itemsize)   # dbl-buffered tiles
        wts = 4 * (KSIZE * C * C * cdt_itemsize + C * 4)              # weights + biases
        tmp = bt * C * (L + 2) * (3 * 4 + 2 * cdt_itemsize)           # in-kernel temporaries
        return io + wts + tmp

    if N >= 4 and C * L < (1 << 16):
        # Tiny per-sample tiles: fold a few samples per step to amortize the
        # ~0.35us/step overhead, but keep >= 4 parallel steps (megacore / v7x 2 TCs).
        candidates = [d for d in (8, 4, 2) if N % d == 0 and N // d >= 4] + [1]
    else:
        candidates = [1]
    for bt in candidates:
        if step_bytes(bt) <= vmem_budget:
            return bt
    return 1


def basic_block5x5(x, w1, g1, be1, m1, v1, w2, g2, be2, m2, v2,
                   *, block_batch=None, compute_dtype=jnp.bfloat16,
                   vmem_limit_bytes=None):
    """x: (N, C, L) float32.  Returns (N, C, L-4).  BatchNorm in inference mode."""
    N, C, L = x.shape
    assert w1.shape == (C, C, KSIZE) and w2.shape == (C, C, KSIZE)
    assert L > 4
    L_out = L - 4

    # Fold eval-mode BatchNorm: scale goes into the conv weights (commutes with the
    # per-output-channel conv), bias stays as a (C, 1) add in the kernel.
    inv1 = (g1 / jnp.sqrt(v1 + EPS)).astype(jnp.float32)
    inv2 = (g2 / jnp.sqrt(v2 + EPS)).astype(jnp.float32)
    b1 = (be1 - m1 * inv1).reshape(C, 1).astype(jnp.float32)
    b2 = (be2 - m2 * inv2).reshape(C, 1).astype(jnp.float32)

    # Tap-major weights with BN scale folded in: w1t[k, o, i] = w1[o, i, k] * inv1[o].
    w1t = (jnp.transpose(w1, (2, 0, 1)) * inv1[None, :, None]).astype(compute_dtype)
    w2t = (jnp.transpose(w2, (2, 0, 1)) * inv2[None, :, None]).astype(compute_dtype)

    cdt_itemsize = np.dtype(compute_dtype).itemsize
    if vmem_limit_bytes is None:
        cap = _vmem_capacity_bytes()
        vmem_limit_bytes = max(32 * 1024 * 1024,
                               min(int(0.7 * cap), 100 * 1024 * 1024))
    if block_batch is None:
        Bt = _pick_block_batch(N, C, L, x.dtype.itemsize, x.dtype.itemsize,
                               cdt_itemsize, int(0.8 * vmem_limit_bytes))
    else:
        Bt = block_batch
    assert N % Bt == 0

    full = lambda shape: pl.BlockSpec(shape, lambda n: (0,) * len(shape))

    return pl.pallas_call(
        basic_block5x5_kernel,
        out_shape=jax.ShapeDtypeStruct((N, C, L_out), x.dtype),
        grid_spec=pltpu.PrefetchScalarGridSpec(
            num_scalar_prefetch=0,
            grid=(N // Bt,),
            in_specs=[
                pl.BlockSpec((Bt, C, L), lambda n: (n, 0, 0)),   # x (read from HBM once)
                full((KSIZE, C, C)),                             # conv1 weights (tap-major, BN1-scaled)
                full((C, 1)),                                    # bn1 folded bias
                full((KSIZE, C, C)),                             # conv2 weights (tap-major, BN2-scaled)
                full((C, 1)),                                    # bn2 folded bias
            ],
            out_specs=pl.BlockSpec((Bt, C, L_out), lambda n: (n, 0, 0)),
        ),
        compiler_params=pltpu.CompilerParams(
            dimension_semantics=("parallel",),
            vmem_limit_bytes=int(vmem_limit_bytes)),
    )(x, w1t, b1, w2t, b2)


def reference(x, w1, g1, be1, m1, v1, w2, g2, be2, m2, v2):
    """Pure-JAX reference mirroring the PyTorch forward (BN in eval mode)."""
    def conv(inp, w):
        return lax.conv_general_dilated(
            inp, w, window_strides=(1,), padding=[(PAD, PAD)],
            dimension_numbers=('NCH', 'OIH', 'NCH'))

    def bn(inp, g, b, m, v):
        return (inp - m[None, :, None]) / jnp.sqrt(v[None, :, None] + EPS) \
            * g[None, :, None] + b[None, :, None]

    def elu(t):
        return jnp.where(t > 0, t, jnp.exp(jnp.minimum(t, 0.0)) - 1.0)

    out = elu(bn(conv(x, w1), g1, be1, m1, v1))
    out = bn(conv(out, w2), g2, be2, m2, v2)
    d = x.shape[2] - out.shape[2]
    return elu(x[:, :, 0:-d] + out)


if __name__ == "__main__":
    key = jax.random.PRNGKey(0)
    N, C, L = 2, 8, 16           # inplanes5 == planes (downsample=None, stride=1)

    ks = jax.random.split(key, 11)
    x  = jax.random.normal(ks[0], (N, C, L), jnp.float32)
    w1 = jax.random.normal(ks[1], (C, C, KSIZE), jnp.float32) * 0.2
    w2 = jax.random.normal(ks[2], (C, C, KSIZE), jnp.float32) * 0.2
    g1  = 1.0 + 0.1 * jax.random.normal(ks[3], (C,), jnp.float32)
    be1 = 0.1 * jax.random.normal(ks[4], (C,), jnp.float32)
    m1  = 0.1 * jax.random.normal(ks[5], (C,), jnp.float32)
    v1  = 1.0 + 0.1 * jax.random.uniform(ks[6], (C,), jnp.float32)
    g2  = 1.0 + 0.1 * jax.random.normal(ks[7], (C,), jnp.float32)
    be2 = 0.1 * jax.random.normal(ks[8], (C,), jnp.float32)
    m2  = 0.1 * jax.random.normal(ks[9], (C,), jnp.float32)
    v2  = 1.0 + 0.1 * jax.random.uniform(ks[10], (C,), jnp.float32)

    # Performance default: bf16 MXU operands, f32 accumulation / elementwise math.
    out_bf16 = jax.block_until_ready(
        basic_block5x5(x, w1, g1, be1, m1, v1, w2, g2, be2, m2, v2))
    # Exact path: f32 operands (tight numerical check against the reference).
    out_f32 = jax.block_until_ready(
        basic_block5x5(x, w1, g1, be1, m1, v1, w2, g2, be2, m2, v2,
                       compute_dtype=jnp.float32))

    ref = reference(x, w1, g1, be1, m1, v1, w2, g2, be2, m2, v2)
    np.testing.assert_allclose(np.asarray(out_f32), np.asarray(ref),
                               rtol=1e-5, atol=1e-5)
    np.testing.assert_allclose(np.asarray(out_bf16), np.asarray(ref),
                               rtol=5e-2, atol=8e-2)
    print("KERNEL_OK")
</pallas_src>

<mosaic_0001>
module attributes {stable_mosaic.version = 11 : i64} {
  func.func @basic_block5x5_kernel(%arg0: i32, %arg1: memref<1x8x16xf32, #tpu.memory_space<vmem>>, %arg2: memref<5x8x8xbf16, #tpu.memory_space<vmem>>, %arg3: memref<8x1xf32, #tpu.memory_space<vmem>>, %arg4: memref<5x8x8xbf16, #tpu.memory_space<vmem>>, %arg5: memref<8x1xf32, #tpu.memory_space<vmem>>, %arg6: memref<1x8x12xf32, #tpu.memory_space<vmem>>) attributes {dimension_semantics = [#tpu.dimension_semantics<parallel>], iteration_bounds = array<i64: 2>, scalar_prefetch = 0 : i64, scratch_operands = 0 : i64, tpu.core_type = #tpu.core_type<tc>, window_params = [{transform_indices = @transform_0, window_bounds = array<i64: 1, 8, 16>}, {pipeline_mode = #tpu.pipeline_mode<synchronous>, transform_indices = @transform_1, window_bounds = array<i64: 5, 8, 8>}, {pipeline_mode = #tpu.pipeline_mode<synchronous>, transform_indices = @transform_2, window_bounds = array<i64: 8, 1>}, {pipeline_mode = #tpu.pipeline_mode<synchronous>, transform_indices = @transform_3, window_bounds = array<i64: 5, 8, 8>}, {pipeline_mode = #tpu.pipeline_mode<synchronous>, transform_indices = @transform_4, window_bounds = array<i64: 8, 1>}, {transform_indices = @transform_5, window_bounds = array<i64: 1, 8, 12>}]} {
    %c0 = arith.constant 0 : index
    %c0_0 = arith.constant 0 : index
    %0 = vector.load %arg3[%c0, %c0_0] : memref<8x1xf32, #tpu.memory_space<vmem>>, vector<8x1xf32>
    %c0_1 = arith.constant 0 : index
    %c0_2 = arith.constant 0 : index
    %1 = vector.load %arg5[%c0_1, %c0_2] : memref<8x1xf32, #tpu.memory_space<vmem>>, vector<8x1xf32>
    %cst = arith.constant 0.000000e+00 : bf16
    %2 = vector.broadcast %cst : bf16 to vector<8x1xbf16>
    %c0_3 = arith.constant 0 : index
    %c0_4 = arith.constant 0 : index
    %c0_5 = arith.constant 0 : index
    %3 = vector.load %arg1[%c0_3, %c0_4, %c0_5] : memref<1x8x16xf32, #tpu.memory_space<vmem>>, vector<1x8x16xf32>
    %4 = vector.shape_cast %3 : vector<1x8x16xf32> to vector<8x16xf32>
    %5 = arith.truncf %4 : vector<8x16xf32> to vector<8x16xbf16>
    %6 = tpu.concatenate %2, %5, %2 in 1 : vector<8x1xbf16>, vector<8x16xbf16>, vector<8x1xbf16> -> vector<8x18xbf16>
    %c0_6 = arith.constant 0 : index
    %c0_7 = arith.constant 0 : index
    %c0_8 = arith.constant 0 : index
    %7 = vector.load %arg2[%c0_6, %c0_7, %c0_8] : memref<5x8x8xbf16, #tpu.memory_space<vmem>>, vector<1x8x8xbf16>
    %8 = vector.shape_cast %7 : vector<1x8x8xbf16> to vector<8x8xbf16>
    %9 = vector.extract_strided_slice %6 {offsets = [0, 0], sizes = [8, 14], strides = [1, 1]} : vector<8x18xbf16> to vector<8x14xbf16>
    %cst_9 = arith.constant dense<0.000000e+00> : vector<8x14xf32>
    %10 = tpu.matmul %8, %9, %cst_9 {dimension_numbers = #tpu.dot_dimension_numbers<[1], [0], [0], [1], [0, 0, 1, 1], [], []>} : vector<8x8xbf16>, vector<8x14xbf16>, vector<8x14xf32> -> vector<8x14xf32>
    %c1 = arith.constant 1 : index
    %c0_10 = arith.constant 0 : index
    %c0_11 = arith.constant 0 : index
    %11 = vector.load %arg2[%c1, %c0_10, %c0_11] : memref<5x8x8xbf16, #tpu.memory_space<vmem>>, vector<1x8x8xbf16>
    %12 = vector.shape_cast %11 : vector<1x8x8xbf16> to vector<8x8xbf16>
    %13 = vector.extract_strided_slice %6 {offsets = [0, 1], sizes = [8, 14], strides = [1, 1]} : vector<8x18xbf16> to vector<8x14xbf16>
    %cst_12 = arith.constant dense<0.000000e+00> : vector<8x14xf32>
    %14 = tpu.matmul %12, %13, %cst_12 {dimension_numbers = #tpu.dot_dimension_numbers<[1], [0], [0], [1], [0, 0, 1, 1], [], []>} : vector<8x8xbf16>, vector<8x14xbf16>, vector<8x14xf32> -> vector<8x14xf32>
    %15 = arith.addf %10, %14 : vector<8x14xf32>
    %c2 = arith.constant 2 : index
    %c0_13 = arith.constant 0 : index
    %c0_14 = arith.constant 0 : index
    %16 = vector.load %arg2[%c2, %c0_13, %c0_14] : memref<5x8x8xbf16, #tpu.memory_space<vmem>>, vector<1x8x8xbf16>
    %17 = vector.shape_cast %16 : vector<1x8x8xbf16> to vector<8x8xbf16>
    %18 = vector.extract_strided_slice %6 {offsets = [0, 2], sizes = [8, 14], strides = [1, 1]} : vector<8x18xbf16> to vector<8x14xbf16>
    %cst_15 = arith.constant dense<0.000000e+00> : vector<8x14xf32>
    %19 = tpu.matmul %17, %18, %cst_15 {dimension_numbers = #tpu.dot_dimension_numbers<[1], [0], [0], [1], [0, 0, 1, 1], [], []>} : vector<8x8xbf16>, vector<8x14xbf16>, vector<8x14xf32> -> vector<8x14xf32>
    %20 = arith.addf %15, %19 : vector<8x14xf32>
    %c3 = arith.constant 3 : index
    %c0_16 = arith.constant 0 : index
    %c0_17 = arith.constant 0 : index
    %21 = vector.load %arg2[%c3, %c0_16, %c0_17] : memref<5x8x8xbf16, #tpu.memory_space<vmem>>, vector<1x8x8xbf16>
    %22 = vector.shape_cast %21 : vector<1x8x8xbf16> to vector<8x8xbf16>
    %23 = vector.extract_strided_slice %6 {offsets = [0, 3], sizes = [8, 14], strides = [1, 1]} : vector<8x18xbf16> to vector<8x14xbf16>
    %cst_18 = arith.constant dense<0.000000e+00> : vector<8x14xf32>
    %24 = tpu.matmul %22, %23, %cst_18 {dimension_numbers = #tpu.dot_dimension_numbers<[1], [0], [0], [1], [0, 0, 1, 1], [], []>} : vector<8x8xbf16>, vector<8x14xbf16>, vector<8x14xf32> -> vector<8x14xf32>
    %25 = arith.addf %20, %24 : vector<8x14xf32>
    %c4 = arith.constant 4 : index
    %c0_19 = arith.constant 0 : index
    %c0_20 = arith.constant 0 : index
    %26 = vector.load %arg2[%c4, %c0_19, %c0_20] : memref<5x8x8xbf16, #tpu.memory_space<vmem>>, vector<1x8x8xbf16>
    %27 = vector.shape_cast %26 : vector<1x8x8xbf16> to vector<8x8xbf16>
    %28 = vector.extract_strided_slice %6 {offsets = [0, 4], sizes = [8, 14], strides = [1, 1]} : vector<8x18xbf16> to vector<8x14xbf16>
    %cst_21 = arith.constant dense<0.000000e+00> : vector<8x14xf32>
    %29 = tpu.matmul %27, %28, %cst_21 {dimension_numbers = #tpu.dot_dimension_numbers<[1], [0], [0], [1], [0, 0, 1, 1], [], []>} : vector<8x8xbf16>, vector<8x14xbf16>, vector<8x14xf32> -> vector<8x14xf32>
    %30 = arith.addf %25, %29 : vector<8x14xf32>
    %31 = vector.broadcast %0 : vector<8x1xf32> to vector<8x14xf32>
    %32 = arith.addf %30, %31 : vector<8x14xf32>
    %cst_22 = arith.constant 0.000000e+00 : f32
    %33 = vector.broadcast %cst_22 : f32 to vector<8x14xf32>
    %34 = arith.cmpf ogt, %32, %33 : vector<8x14xf32>
    %cst_23 = arith.constant 0.000000e+00 : f32
    %35 = vector.broadcast %cst_23 : f32 to vector<8x14xf32>
    %36 = arith.minimumf %32, %35 : vector<8x14xf32>
    %37 = math.exp %36 : vector<8x14xf32>
    %cst_24 = arith.constant 1.000000e+00 : f32
    %38 = vector.broadcast %cst_24 : f32 to vector<8x14xf32>
    %39 = arith.subf %37, %38 : vector<8x14xf32>
    %40 = arith.select %34, %32, %39 : vector<8x14xi1>, vector<8x14xf32>
    %41 = arith.truncf %40 : vector<8x14xf32> to vector<8x14xbf16>
    %42 = tpu.concatenate %2, %41, %2 in 1 : vector<8x1xbf16>, vector<8x14xbf16>, vector<8x1xbf16> -> vector<8x16xbf16>
    %c0_25 = arith.constant 0 : index
    %c0_26 = arith.constant 0 : index
    %c0_27 = arith.constant 0 : index
    %43 = vector.load %arg4[%c0_25, %c0_26, %c0_27] : memref<5x8x8xbf16, #tpu.memory_space<vmem>>, vector<1x8x8xbf16>
    %44 = vector.shape_cast %43 : vector<1x8x8xbf16> to vector<8x8xbf16>
    %45 = vector.extract_strided_slice %42 {offsets = [0, 0], sizes = [8, 12], strides = [1, 1]} : vector<8x16xbf16> to vector<8x12xbf16>
    %cst_28 = arith.constant dense<0.000000e+00> : vector<8x12xf32>
    %46 = tpu.matmul %44, %45, %cst_28 {dimension_numbers = #tpu.dot_dimension_numbers<[1], [0], [0], [1], [0, 0, 1, 1], [], []>} : vector<8x8xbf16>, vector<8x12xbf16>, vector<8x12xf32> -> vector<8x12xf32>
    %c1_29 = arith.constant 1 : index
    %c0_30 = arith.constant 0 : index
    %c0_31 = arith.constant 0 : index
    %47 = vector.load %arg4[%c1_29, %c0_30, %c0_31] : memref<5x8x8xbf16, #tpu.memory_space<vmem>>, vector<1x8x8xbf16>
    %48 = vector.shape_cast %47 : vector<1x8x8xbf16> to vector<8x8xbf16>
    %49 = vector.extract_strided_slice %42 {offsets = [0, 1], sizes = [8, 12], strides = [1, 1]} : vector<8x16xbf16> to vector<8x12xbf16>
    %cst_32 = arith.constant dense<0.000000e+00> : vector<8x12xf32>
    %50 = tpu.matmul %48, %49, %cst_32 {dimension_numbers = #tpu.dot_dimension_numbers<[1], [0], [0], [1], [0, 0, 1, 1], [], []>} : vector<8x8xbf16>, vector<8x12xbf16>, vector<8x12xf32> -> vector<8x12xf32>
    %51 = arith.addf %46, %50 : vector<8x12xf32>
    %c2_33 = arith.constant 2 : index
    %c0_34 = arith.constant 0 : index
    %c0_35 = arith.constant 0 : index
    %52 = vector.load %arg4[%c2_33, %c0_34, %c0_35] : memref<5x8x8xbf16, #tpu.memory_space<vmem>>, vector<1x8x8xbf16>
    %53 = vector.shape_cast %52 : vector<1x8x8xbf16> to vector<8x8xbf16>
    %54 = vector.extract_strided_slice %42 {offsets = [0, 2], sizes = [8, 12], strides = [1, 1]} : vector<8x16xbf16> to vector<8x12xbf16>
    %cst_36 = arith.constant dense<0.000000e+00> : vector<8x12xf32>
    %55 = tpu.matmul %53, %54, %cst_36 {dimension_numbers = #tpu.dot_dimension_numbers<[1], [0], [0], [1], [0, 0, 1, 1], [], []>} : vector<8x8xbf16>, vector<8x12xbf16>, vector<8x12xf32> -> vector<8x12xf32>
    %56 = arith.addf %51, %55 : vector<8x12xf32>
    %c3_37 = arith.constant 3 : index
    %c0_38 = arith.constant 0 : index
    %c0_39 = arith.constant 0 : index
    %57 = vector.load %arg4[%c3_37, %c0_38, %c0_39] : memref<5x8x8xbf16, #tpu.memory_space<vmem>>, vector<1x8x8xbf16>
    %58 = vector.shape_cast %57 : vector<1x8x8xbf16> to vector<8x8xbf16>
    %59 = vector.extract_strided_slice %42 {offsets = [0, 3], sizes = [8, 12], strides = [1, 1]} : vector<8x16xbf16> to vector<8x12xbf16>
    %cst_40 = arith.constant dense<0.000000e+00> : vector<8x12xf32>
    %60 = tpu.matmul %58, %59, %cst_40 {dimension_numbers = #tpu.dot_dimension_numbers<[1], [0], [0], [1], [0, 0, 1, 1], [], []>} : vector<8x8xbf16>, vector<8x12xbf16>, vector<8x12xf32> -> vector<8x12xf32>
    %61 = arith.addf %56, %60 : vector<8x12xf32>
    %c4_41 = arith.constant 4 : index
    %c0_42 = arith.constant 0 : index
    %c0_43 = arith.constant 0 : index
    %62 = vector.load %arg4[%c4_41, %c0_42, %c0_43] : memref<5x8x8xbf16, #tpu.memory_space<vmem>>, vector<1x8x8xbf16>
    %63 = vector.shape_cast %62 : vector<1x8x8xbf16> to vector<8x8xbf16>
    %64 = vector.extract_strided_slice %42 {offsets = [0, 4], sizes = [8, 12], strides = [1, 1]} : vector<8x16xbf16> to vector<8x12xbf16>
    %cst_44 = arith.constant dense<0.000000e+00> : vector<8x12xf32>
    %65 = tpu.matmul %63, %64, %cst_44 {dimension_numbers = #tpu.dot_dimension_numbers<[1], [0], [0], [1], [0, 0, 1, 1], [], []>} : vector<8x8xbf16>, vector<8x12xbf16>, vector<8x12xf32> -> vector<8x12xf32>
    %66 = arith.addf %61, %65 : vector<8x12xf32>
    %67 = vector.extract_strided_slice %4 {offsets = [0, 0], sizes = [8, 12], strides = [1, 1]} : vector<8x16xf32> to vector<8x12xf32>
    %68 = vector.broadcast %1 : vector<8x1xf32> to vector<8x12xf32>
    %69 = arith.addf %66, %68 : vector<8x12xf32>
    %70 = arith.addf %67, %69 : vector<8x12xf32>
    %cst_45 = arith.constant 0.000000e+00 : f32
    %71 = vector.broadcast %cst_45 : f32 to vector<8x12xf32>
    %72 = arith.cmpf ogt, %70, %71 : vector<8x12xf32>
    %cst_46 = arith.constant 0.000000e+00 : f32
    %73 = vector.broadcast %cst_46 : f32 to vector<8x12xf32>
    %74 = arith.minimumf %70, %73 : vector<8x12xf32>
    %75 = math.exp %74 : vector<8x12xf32>
    %cst_47 = arith.constant 1.000000e+00 : f32
    %76 = vector.broadcast %cst_47 : f32 to vector<8x12xf32>
    %77 = arith.subf %75, %76 : vector<8x12xf32>
    %78 = arith.select %72, %70, %77 : vector<8x12xi1>, vector<8x12xf32>
    %c0_48 = arith.constant 0 : index
    %c0_49 = arith.constant 0 : index
    %c0_50 = arith.constant 0 : index
    %79 = vector.load %arg6[%c0_48, %c0_49, %c0_50] : memref<1x8x12xf32, #tpu.memory_space<vmem>>, vector<1x8x12xf32>
    %80 = vector.shape_cast %79 : vector<1x8x12xf32> to vector<8x12xf32>
    %81 = vector.shape_cast %78 : vector<8x12xf32> to vector<1x8x12xf32>
    tpu.vector_store %arg6[%c0_48, %c0_49, %c0_50], %81 {strides = array<i32>} : memref<1x8x12xf32, #tpu.memory_space<vmem>>, vector<1x8x12xf32>,
    return
  }
  func.func @transform_0(%arg0: i32) -> (i32, i32, i32) {
    %c0_i32 = arith.constant 0 : i32
    %c0_i32_0 = arith.constant 0 : i32
    %c0_i32_1 = arith.constant 0 : i32
    return %arg0, %c0_i32, %c0_i32_0 : i32, i32, i32
  }
  func.func @transform_1(%arg0: i32) -> (i32, i32, i32) {
    %c0_i32 = arith.constant 0 : i32
    %c0_i32_0 = arith.constant 0 : i32
    %c0_i32_1 = arith.constant 0 : i32
    %c0_i32_2 = arith.constant 0 : i32
    return %c0_i32, %c0_i32_0, %c0_i32_1 : i32, i32, i32
  }
  func.func @transform_2(%arg0: i32) -> (i32, i32) {
    %c0_i32 = arith.constant 0 : i32
    %c0_i32_0 = arith.constant 0 : i32
    %c0_i32_1 = arith.constant 0 : i32
    return %c0_i32, %c0_i32_0 : i32, i32
  }
  func.func @transform_3(%arg0: i32) -> (i32, i32, i32) {
    %c0_i32 = arith.constant 0 : i32
    %c0_i32_0 = arith.constant 0 : i32
    %c0_i32_1 = arith.constant 0 : i32
    %c0_i32_2 = arith.constant 0 : i32
    return %c0_i32, %c0_i32_0, %c0_i32_1 : i32, i32, i32
  }
  func.func @transform_4(%arg0: i32) -> (i32, i32) {
    %c0_i32 = arith.constant 0 : i32
    %c0_i32_0 = arith.constant 0 : i32
    %c0_i32_1 = arith.constant 0 : i32
    return %c0_i32, %c0_i32_0 : i32, i32
  }
  func.func @transform_5(%arg0: i32) -> (i32, i32, i32) {
    %c0_i32 = arith.constant 0 : i32
    %c0_i32_0 = arith.constant 0 : i32
    %c0_i32_1 = arith.constant 0 : i32
    return %arg0, %c0_i32, %c0_i32_0 : i32, i32, i32
  }
}

</mosaic_0001>

<llo_original>
// kernel: tpu_custom_call.1
$region0: #{tpu_custom_call.1}
  #allocation0 [shape = 'u32[]', space=smem, size = 0x4, offset = 0x4, fixed_abs, tag = 'smem constant byte address 0x4 - core index']
  #allocation1 [shape = 'u32[144,128]{1,0:T(1,128)}', space=vmem, size = 0x12000, scoped, tag = 'internal scratch']
  %s0 = inlined_call_operand.hbm [shape: f32[2,8,16], index: 0, kind: input, shape index: {}]
  %s1 = inlined_call_operand.vmem [shape: bf16[5,8,8], index: 1, kind: input, shape index: {}]
  %s2 = inlined_call_operand.vmem [shape: f32[8,1], index: 2, kind: input, shape index: {}]
  %s3 = inlined_call_operand.hbm [shape: bf16[5,8,8], index: 3, kind: input, shape index: {}]
  %s4 = inlined_call_operand.vmem [shape: f32[8,1], index: 4, kind: input, shape index: {}]
  %s5 = inlined_call_operand.hbm [shape: f32[2,8,12], index: 5, kind: output, shape index: {}]
  %s6 = sld [smem:[#allocation0]]
  $region61: #{tpu_custom_call.1} parent=0
    _
  %s8 = ssub.s32 1, %s6
  %s9 = scalar_select 0, %s8, %s6
  $region1: #{tpu_custom_call.1} parent=0
    #allocation2 [shape = 'u8[8192]{0}', space=vmem, size = 0x2000, scoped, tag = 'input window, operand 0']
    #allocation3 [shape = 's32[2]{0}', space=sflag, size = 0x8, scoped, tag = 'scoped memory for tpu_custom_call.1']
    #allocation4 [shape = 's32[2]{0}', space=sflag, size = 0x8, scoped, tag = 'scoped memory for tpu_custom_call.1']
    #allocation5 [shape = 'u8[10240]{0}', space=vmem, size = 0x2800, scoped, tag = 'input window, operand 3, single buffered']
    #allocation6 [shape = 's32[1]{0}', space=sflag, size = 0x4, scoped, tag = 'scoped memory for tpu_custom_call.1']
    #allocation7 [shape = 'u8[8192]{0}', space=vmem, size = 0x2000, scoped, tag = 'output window, operand 0']
    %10 = vsyncpa [#allocation3], 0
    %s11 = scalar_lea.sflag [#allocation3], 1
    %12 = vsyncpa %s11, 0
    %13 = vsyncpa [#allocation6], 0
    %14 = vsyncpa [#allocation4], 0
    %s15 = scalar_lea.sflag [#allocation4], 1
    %16 = vsyncpa %s15, 0
    loop: start=0, step=1, limit=4
    $region2: #{tpu_custom_call.1} parent=1 // loop_pre_header
      _
    $region3: #{tpu_custom_call.1} parent=1 // loop_header
      %s18 = sphi 0, %s22
      %p19 = scmp.ge.s32.totalorder %s18, 4
      %s28 = sphi 0, %s30
      %s31 = sphi 0, %s28
      %s32 = sphi 0, %s31
      %s48 = sphi 0, %s32
      %s52 = sphi 0, %s52
      %s54 = sphi 0, %s52
      %s55 = sphi 0, %s54
      %s69 = sphi 0, %s55
      %s73 = sphi 0, %s73
      %s75 = sphi 0, %s73
      %s76 = sphi 0, %s75
      %s90 = sphi 0, %s76
      %s94 = sphi 0, %s94
      %s96 = sphi 0, %s94
      %s97 = sphi 0, %s96
      %s111 = sphi 0, %s97
      %s115 = sphi 0, %s115
      %s117 = sphi 0, %s115
      %s118 = sphi 0, %s117
      %s132 = sphi 0, %s118
      %s138 = sphi 0, %s140
      %s141 = sphi 0, %s138
      %s142 = sphi 0, %s141
      %s158 = sphi 0, %s142
    $region4: #{tpu_custom_call.1} parent=1 // loop_header_branch
      %21 = sbr.rel (%p19) target = $region8
    $region5: #{tpu_custom_call.1} parent=1 // loop_body
      %s23 = ssub.s32 %s18, 1
      %s24 = ssub.s32 %s18, 2
      %s25 = sadd.s32 %s18, 1
      %s26 = ssub.s32 %s18, %s25
      %p27 = scmp.eq.s32.totalorder %s26, 0
      %s29 = sadd.s32 %s28, 1
      %s30 = scalar_select %p27, %s28, %s29
      %p33 = pneg %p27
      %p34 = scmp.eq.s32.totalorder %s18, 1
      %p35 = por %p33, %p34
      %p36 = scmp.ne.s32.totalorder %s28, %s31
      %p37 = scmp.eq.s32.totalorder %s18, 0
      %p38 = por %p36, %p37
      %p39 = scmp.ne.s32.totalorder %s28, %s31
      %p40 = scmp.eq.s32.totalorder %s23, 1
      %p41 = por %p39, %p40
      %p42 = scmp.ne.s32.totalorder %s31, %s32
      %p43 = scmp.eq.s32.totalorder %s23, 0
      %p44 = por %p42, %p43
      %p45 = scmp.ne.s32.totalorder %s31, %s32
      %p46 = scmp.eq.s32.totalorder %s24, 1
      %p47 = por %p45, %p46
      %p49 = scmp.ne.s32.totalorder %s32, %s48
      %p50 = scmp.eq.s32.totalorder %s24, 0
      %p51 = por %p49, %p50
      %s53 = sadd.s32 %s52, 1
      %p56 = scmp.eq.s32.totalorder %s18, 1
      %p57 = scmp.ne.s32.totalorder %s52, %s54
      %p58 = scmp.eq.s32.totalorder %s18, 0
      %p59 = por %p57, %p58
      %p60 = scmp.ne.s32.totalorder %s52, %s54
      %p61 = scmp.eq.s32.totalorder %s23, 1
      %p62 = por %p60, %p61
      %p63 = scmp.ne.s32.totalorder %s54, %s55
      %p64 = scmp.eq.s32.totalorder %s23, 0
      %p65 = por %p63, %p64
      %p66 = scmp.ne.s32.totalorder %s54, %s55
      %p67 = scmp.eq.s32.totalorder %s24, 1
      %p68 = por %p66, %p67
      %p70 = scmp.ne.s32.totalorder %s55, %s69
      %p71 = scmp.eq.s32.totalorder %s24, 0
      %p72 = por %p70, %p71
      %s74 = sadd.s32 %s73, 1
      %p77 = scmp.eq.s32.totalorder %s18, 1
      %p78 = scmp.ne.s32.totalorder %s73, %s75
      %p79 = scmp.eq.s32.totalorder %s18, 0
      %p80 = por %p78, %p79
      %p81 = scmp.ne.s32.totalorder %s73, %s75
      %p82 = scmp.eq.s32.totalorder %s23, 1
      %p83 = por %p81, %p82
      %p84 = scmp.ne.s32.totalorder %s75, %s76
      %p85 = scmp.eq.s32.totalorder %s23, 0
      %p86 = por %p84, %p85
      %p87 = scmp.ne.s32.totalorder %s75, %s76
      %p88 = scmp.eq.s32.totalorder %s24, 1
      %p89 = por %p87, %p88
      %p91 = scmp.ne.s32.totalorder %s76, %s90
      %p92 = scmp.eq.s32.totalorder %s24, 0
      %p93 = por %p91, %p92
      %s95 = sadd.s32 %s94, 1
      %p98 = scmp.eq.s32.totalorder %s18, 1
      %p99 = scmp.ne.s32.totalorder %s94, %s96
      %p100 = scmp.eq.s32.totalorder %s18, 0
      %p101 = por %p99, %p100
      %p102 = scmp.ne.s32.totalorder %s94, %s96
      %p103 = scmp.eq.s32.totalorder %s23, 1
      %p104 = por %p102, %p103
      %p105 = scmp.ne.s32.totalorder %s96, %s97
      %p106 = scmp.eq.s32.totalorder %s23, 0
      %p107 = por %p105, %p106
      %p108 = scmp.ne.s32.totalorder %s96, %s97
      %p109 = scmp.eq.s32.totalorder %s24, 1
      %p110 = por %p108, %p109
      %p112 = scmp.ne.s32.totalorder %s97, %s111
      %p113 = scmp.eq.s32.totalorder %s24, 0
      %p114 = por %p112, %p113
      %s116 = sadd.s32 %s115, 1
      %p119 = scmp.eq.s32.totalorder %s18, 1
      %p120 = scmp.ne.s32.totalorder %s115, %s117
      %p121 = scmp.eq.s32.totalorder %s18, 0
      %p122 = por %p120, %p121
      %p123 = scmp.ne.s32.totalorder %s115, %s117
      %p124 = scmp.eq.s32.totalorder %s23, 1
      %p125 = por %p123, %p124
      %p126 = scmp.ne.s32.totalorder %s117, %s118
      %p127 = scmp.eq.s32.totalorder %s23, 0
      %p128 = por %p126, %p127
      %p129 = scmp.ne.s32.totalorder %s117, %s118
      %p130 = scmp.eq.s32.totalorder %s24, 1
      %p131 = por %p129, %p130
      %p133 = scmp.ne.s32.totalorder %s118, %s132
      %p134 = scmp.eq.s32.totalorder %s24, 0
      %p135 = por %p133, %p134
      %s136 = ssub.s32 %s18, %s25
      %p137 = scmp.eq.s32.totalorder %s136, 0
      %s139 = sadd.s32 %s138, 1
      %s140 = scalar_select %p137, %s138, %s139
      %p143 = pneg %p137
      %p144 = scmp.eq.s32.totalorder %s18, 1
      %p145 = por %p143, %p144
      %p146 = scmp.ne.s32.totalorder %s138, %s141
      %p147 = scmp.eq.s32.totalorder %s18, 0
      %p148 = por %p146, %p147
      %p149 = scmp.ne.s32.totalorder %s138, %s141
      %p150 = scmp.eq.s32.totalorder %s23, 1
      %p151 = por %p149, %p150
      %p152 = scmp.ne.s32.totalorder %s141, %s142
      %p153 = scmp.eq.s32.totalorder %s23, 0
      %p154 = por %p152, %p153
      %p155 = scmp.ne.s32.totalorder %s141, %s142
      %p156 = scmp.eq.s32.totalorder %s24, 1
      %p157 = por %p155, %p156
      %p159 = scmp.ne.s32.totalorder %s142, %s158
      %p160 = scmp.eq.s32.totalorder %s24, 0
      %p161 = por %p159, %p160
      %p162 = scmp.le.s32.totalorder 1, %s18
      %p163 = scmp.lt.s32.totalorder %s18, 3
      %p164 = pnand %p162, %p163
      %p165 = pneg %p164
      // Predicated region
      $region9: #{tpu_custom_call.1} parent=5 // pred_check
        _
      $region10: #{tpu_custom_call.1} parent=5 // pred_check_branch
        %167 = sbr.rel (%p164) target = $region12
      $region11: #{tpu_custom_call.1} parent=5 // pred_region
        %s168 = ssub.s32 %s18, 1
        // Predicated region
        $region13: #{tpu_custom_call.1} parent=11 // pred_check
          %p169 = pneg %p65
        $region14: #{tpu_custom_call.1} parent=11 // pred_check_branch
          %171 = sbr.rel (%p169) target = $region16
        $region15: #{tpu_custom_call.1} parent=11 // pred_region
          _
        $region16: #{tpu_custom_call.1} parent=11 // pred_fallthru
          _
        // Predicated region
        $region17: #{tpu_custom_call.1} parent=11 // pred_check
          %p172 = pneg %p86
        $region18: #{tpu_custom_call.1} parent=11 // pred_check_branch
          %174 = sbr.rel (%p172) target = $region20
        $region19: #{tpu_custom_call.1} parent=11 // pred_region
          _
        $region20: #{tpu_custom_call.1} parent=11 // pred_fallthru
          _
        // Predicated region
        $region21: #{tpu_custom_call.1} parent=11 // pred_check
          %p175 = pneg %p107
        $region22: #{tpu_custom_call.1} parent=11 // pred_check_branch
          %177 = sbr.rel (%p175) target = $region24
        $region23: #{tpu_custom_call.1} parent=11 // pred_region
          %s179 = ssub.s32 320, 320
          %180 = vsyncadd [#allocation6], %s179
          %s181 = sshll.u32 [#allocation5], 4
          %s182 = int_to_ptr.vmem [resolvable:$true] %s181
          %187 = dma.hbm_to_vmem [thread:$0]  %s3, 320, %s182, [#allocation6], 64, 64, 4
        $region24: #{tpu_custom_call.1} parent=11 // pred_fallthru
          _
        // Predicated region
        $region25: #{tpu_custom_call.1} parent=11 // pred_check
          %p188 = pneg %p128
        $region26: #{tpu_custom_call.1} parent=11 // pred_check_branch
          %190 = sbr.rel (%p188) target = $region28
        $region27: #{tpu_custom_call.1} parent=11 // pred_region
          _
        $region28: #{tpu_custom_call.1} parent=11 // pred_fallthru
          _
      $region12: #{tpu_custom_call.1} parent=5 // pred_fallthru
        _
      %p191 = scmp.lt.s32.totalorder %s18, 2
      // Predicated region
      $region29: #{tpu_custom_call.1} parent=5 // pred_check
        %p192 = pneg %p191
      $region30: #{tpu_custom_call.1} parent=5 // pred_check_branch
        %194 = sbr.rel (%p192) target = $region32
      $region31: #{tpu_custom_call.1} parent=5 // pred_region
        // Predicated region
        $region33: #{tpu_custom_call.1} parent=31 // pred_check
          %p195 = pneg %p38
        $region34: #{tpu_custom_call.1} parent=31 // pred_check_branch
          %197 = sbr.rel (%p195) target = $region36
        $region35: #{tpu_custom_call.1} parent=31 // pred_region
          %s198 = sand.u32 %s28, 1
          %s199 = scalar_lea.sflag [#allocation3], %s198
          %s200 = sand.u32 %s28, 1
          %s201 = smul.addr %s200, 8
          %s202 = scalar_lea.vmem [#allocation2], %s201
          %s204 = ssub.s32 128, 128
          %205 = vsyncadd %s199, %s204
          %s206 = smul.addr %s18, 128
          %s207 = scalar_lea.hbm %s0, %s206
          %s209 = sshll.u32 %s202, 4
          %s210 = int_to_ptr.vmem [resolvable:$true] %s209
          %212 = dma.hbm_to_vmem [thread:$0]  %s207, 128, %s210, %s199
        $region36: #{tpu_custom_call.1} parent=31 // pred_fallthru
          _
      $region32: #{tpu_custom_call.1} parent=5 // pred_fallthru
        _
      %p213 = scmp.le.s32.totalorder 1, %s18
      %p214 = scmp.lt.s32.totalorder %s18, 3
      %p215 = pnand %p213, %p214
      %p216 = pneg %p215
      // Predicated region
      $region37: #{tpu_custom_call.1} parent=5 // pred_check
        _
      $region38: #{tpu_custom_call.1} parent=5 // pred_check_branch
        %218 = sbr.rel (%p215) target = $region40
      $region39: #{tpu_custom_call.1} parent=5 // pred_region
        %s219 = ssub.s32 %s18, 1
        %s220 = sand.u32 %s31, 1
        %s221 = scalar_lea.sflag [#allocation3], %s220
        %s222 = sand.u32 %s31, 1
        %s223 = smul.addr %s222, 8
        %s224 = scalar_lea.vmem [#allocation2], %s223
        // Predicated region
        $region41: #{tpu_custom_call.1} parent=39 // pred_check
          %p225 = pneg %p44
        $region42: #{tpu_custom_call.1} parent=39 // pred_check_branch
          %227 = sbr.rel (%p225) target = $region44
        $region43: #{tpu_custom_call.1} parent=39 // pred_region
          %228 = dma.done %s221, 128
        $region44: #{tpu_custom_call.1} parent=39 // pred_fallthru
          _
        // Predicated region
        $region45: #{tpu_custom_call.1} parent=39 // pred_check
          %p229 = pneg %p107
        $region46: #{tpu_custom_call.1} parent=39 // pred_check_branch
          %231 = sbr.rel (%p229) target = $region48
        $region47: #{tpu_custom_call.1} parent=39 // pred_region
          %232 = dma.done [#allocation6], 320
        $region48: #{tpu_custom_call.1} parent=39 // pred_fallthru
          _
        %s233 = sand.u32 %s31, 1
        %s234 = scalar_lea.sflag [#allocation3], %s233
        %s235 = sand.u32 %s31, 1
        %s236 = smul.addr %s235, 8
        %s237 = scalar_lea.vmem [#allocation2], %s236
        %p238 = pneg %p44
        %p239 = pneg %p41
        %p240 = pneg %p65
        %p241 = pneg %p62
        %p242 = pneg %p86
        %p243 = pneg %p83
        %p244 = pneg %p107
        %p245 = pneg %p104
        %p246 = pneg %p128
        %p247 = pneg %p125
        %p248 = pneg %p154
        %p249 = pneg %p151
        %s250 = sand.u32 %s141, 1
        %s251 = scalar_lea.sflag [#allocation4], %s250
        %s252 = sand.u32 %s141, 1
        %s253 = smul.addr %s252, 8
        %s254 = scalar_lea.vmem [#allocation7], %s253
        %v256 = vld [vmem:[%s2] sm:$0xff]
        %v257 = vld [vmem:[%s4] sm:$0xff]
        %v258 = vld [vmem:[%s224] sm:$0xff]
        %v259 = vpack.c.bf16 %v258, %v258
        %261 = vrot.lane.b32.xlu0 %v259, 1
        %v262 = vpop.permute.xlu0 %261
        %vm263 = vcmask 7168
        %v266 = vsel %vm263, 0, %v262
        %vm267 = vcmask 138240
        %v268 = vsel %vm267, %v266, 0
        %v269 = vld [vmem:[%s1] sm:$0xf]
        %s270 = scalar_lea.vmem %s1, 4
        %v271 = vld [vmem:[%s270] sm:$0xf]
        %273 = vrot.lane.b32.xlu0 %v268, 127
        %v274 = vpop.permute.xlu0 %273
        %vm275 = vcmask 64512
        %v277 = vsel %vm275, %v271, 0
        %vm279 = vcmask 1043456
        %v281 = vsel %vm279, %v274, 0
        %283 = vmatprep.subr.bf16.mxu0 0
        %284 = vmatpush1.bf16.msra.mxu0 %v281
        %285 = vmatprep.subr.bf16.mxu0 0
        %286 = vmatpush1.bf16.msra.mxu0 0
        %287 = vmatprep.subr.bf16.mxu0 0
        %288 = vmatpush1.bf16.msra.mxu0 0
        %289 = vmatprep.subr.bf16.mxu0 0
        %290 = vmatpush1.bf16.msra.mxu0 0
        %291 = vmatprep.subr.bf16.mxu0 0
        %292 = vmatpush1.bf16.msra.mxu0 0
        %293 = vmatprep.subr.bf16.mxu0 0
        %294 = vmatpush1.bf16.msra.mxu0 0
        %295 = vmatprep.subr.bf16.mxu0 0
        %296 = vmatpush1.bf16.msra.mxu0 0
        %297 = vmatprep.subr.bf16.mxu0 0
        %298 = vmatpush1.bf16.msra.mxu0 0
        %299 = vmatprep.subr.bf16.mxu0 0
        %300 = vmatpush1.bf16.msra.mxu0 0
        %301 = vmatprep.subr.bf16.mxu0 0
        %302 = vmatpush1.bf16.msra.mxu0 0
        %303 = vmatprep.subr.bf16.mxu0 0
        %304 = vmatpush1.bf16.msra.mxu0 0
        %305 = vmatprep.subr.bf16.mxu0 0
        %306 = vmatpush1.bf16.msra.mxu0 0
        %307 = vmatprep.subr.bf16.mxu0 0
        %308 = vmatpush1.bf16.msra.mxu0 0
        %309 = vmatprep.subr.bf16.mxu0 0
        %310 = vmatpush1.bf16.msra.mxu0 0
        %311 = vmatprep.subr.bf16.mxu0 0
        %312 = vmatpush1.bf16.msra.mxu0 0
        %313 = vmatprep.subr.bf16.mxu0 0
        %314 = vmatpush1.bf16.msra.mxu0 0
        %315 = vmatprep.mubr.bf16.mxu0 0
        %316 = vmatmul.mubr.bf16.gmra.mrb[0].mxu0 %v277
        %v317 = vpop.f32.mrb[0].mxu0
        %v318 = vadd.f32 0.0, %v317
        %v319 = vpop.f32.mrb[0].mxu0
        %v320 = vpop.f32.mrb[0].mxu0
        %v321 = vpop.f32.mrb[0].mxu0
        %322 = vdwg.mxu0
        %v324 = vsel %vm275, %v269, 0
        %v326 = vsel %vm279, %v268, 0
        %328 = vmatprep.subr.bf16.mxu0 0
        %329 = vmatpush1.bf16.msra.mxu0 %v326
        %330 = vmatprep.subr.bf16.mxu0 0
        %331 = vmatpush1.bf16.msra.mxu0 0
        %332 = vmatprep.subr.bf16.mxu0 0
        %333 = vmatpush1.bf16.msra.mxu0 0
        %334 = vmatprep.subr.bf16.mxu0 0
        %335 = vmatpush1.bf16.msra.mxu0 0
        %336 = vmatprep.subr.bf16.mxu0 0
        %337 = vmatpush1.bf16.msra.mxu0 0
        %338 = vmatprep.subr.bf16.mxu0 0
        %339 = vmatpush1.bf16.msra.mxu0 0
        %340 = vmatprep.subr.bf16.mxu0 0
        %341 = vmatpush1.bf16.msra.mxu0 0
        %342 = vmatprep.subr.bf16.mxu0 0
        %343 = vmatpush1.bf16.msra.mxu0 0
        %344 = vmatprep.subr.bf16.mxu0 0
        %345 = vmatpush1.bf16.msra.mxu0 0
        %346 = vmatprep.subr.bf16.mxu0 0
        %347 = vmatpush1.bf16.msra.mxu0 0
        %348 = vmatprep.subr.bf16.mxu0 0
        %349 = vmatpush1.bf16.msra.mxu0 0
        %350 = vmatprep.subr.bf16.mxu0 0
        %351 = vmatpush1.bf16.msra.mxu0 0
        %352 = vmatprep.subr.bf16.mxu0 0
        %353 = vmatpush1.bf16.msra.mxu0 0
        %354 = vmatprep.subr.bf16.mxu0 0
        %355 = vmatpush1.bf16.msra.mxu0 0
        %356 = vmatprep.subr.bf16.mxu0 0
        %357 = vmatpush1.bf16.msra.mxu0 0
        %358 = vmatprep.subr.bf16.mxu0 0
        %359 = vmatpush1.bf16.msra.mxu0 0
        %360 = vmatprep.mubr.bf16.mxu0 0
        %361 = vmatmul.mubr.bf16.gmra.mrb[0].mxu0 %v324
        %v362 = vpop.f32.mrb[0].mxu0
        %v363 = vadd.f32 %v318, %v362
        %v364 = vpop.f32.mrb[0].mxu0
        %v365 = vpop.f32.mrb[0].mxu0
        %v366 = vpop.f32.mrb[0].mxu0
        %367 = vdwg.mxu0
        %s368 = scalar_lea.vmem %s1, 8
        %v369 = vld [vmem:[%s368] sm:$0xf]
        %370 = vrot.lane.b32.xlu0 %v268, 126
        %v371 = vpop.permute.xlu0 %370
        %v373 = vsel %vm275, %v369, 0
        %v376 = vsel %vm279, %v371, 0
        %378 = vmatprep.subr.bf16.mxu0 0
        %379 = vmatpush1.bf16.msra.mxu0 %v376
        %380 = vmatprep.subr.bf16.mxu0 0
        %381 = vmatpush1.bf16.msra.mxu0 0
        %382 = vmatprep.subr.bf16.mxu0 0
        %383 = vmatpush1.bf16.msra.mxu0 0
        %384 = vmatprep.subr.bf16.mxu0 0
        %385 = vmatpush1.bf16.msra.mxu0 0
        %386 = vmatprep.subr.bf16.mxu0 0
        %387 = vmatpush1.bf16.msra.mxu0 0
        %388 = vmatprep.subr.bf16.mxu0 0
        %389 = vmatpush1.bf16.msra.mxu0 0
        %390 = vmatprep.subr.bf16.mxu0 0
        %391 = vmatpush1.bf16.msra.mxu0 0
        %392 = vmatprep.subr.bf16.mxu0 0
        %393 = vmatpush1.bf16.msra.mxu0 0
        %394 = vmatprep.subr.bf16.mxu0 0
        %395 = vmatpush1.bf16.msra.mxu0 0
        %396 = vmatprep.subr.bf16.mxu0 0
        %397 = vmatpush1.bf16.msra.mxu0 0
        %398 = vmatprep.subr.bf16.mxu0 0
        %399 = vmatpush1.bf16.msra.mxu0 0
        %400 = vmatprep.subr.bf16.mxu0 0
        %401 = vmatpush1.bf16.msra.mxu0 0
        %402 = vmatprep.subr.bf16.mxu0 0
        %403 = vmatpush1.bf16.msra.mxu0 0
        %404 = vmatprep.subr.bf16.mxu0 0
        %405 = vmatpush1.bf16.msra.mxu0 0
        %406 = vmatprep.subr.bf16.mxu0 0
        %407 = vmatpush1.bf16.msra.mxu0 0
        %408 = vmatprep.subr.bf16.mxu0 0
        %409 = vmatpush1.bf16.msra.mxu0 0
        %410 = vmatprep.mubr.bf16.mxu0 0
        %411 = vmatmul.mubr.bf16.gmra.mrb[0].mxu0 %v373
        %v412 = vpop.f32.mrb[0].mxu0
        %v413 = vadd.f32 0.0, %v412
        %v414 = vpop.f32.mrb[0].mxu0
        %v415 = vpop.f32.mrb[0].mxu0
        %v416 = vpop.f32.mrb[0].mxu0
        %417 = vdwg.mxu0
        %v418 = vadd.f32 %v363, %v413
        %s419 = scalar_lea.vmem %s1, 12
        %v420 = vld [vmem:[%s419] sm:$0xf]
        %421 = vrot.lane.b32.xlu0 %v268, 125
        %v422 = vpop.permute.xlu0 %421
        %v424 = vsel %vm275, %v420, 0
        %v427 = vsel %vm279, %v422, 0
        %429 = vmatprep.subr.bf16.mxu0 0
        %430 = vmatpush1.bf16.msra.mxu0 %v427
        %431 = vmatprep.subr.bf16.mxu0 0
        %432 = vmatpush1.bf16.msra.mxu0 0
        %433 = vmatprep.subr.bf16.mxu0 0
        %434 = vmatpush1.bf16.msra.mxu0 0
        %435 = vmatprep.subr.bf16.mxu0 0
        %436 = vmatpush1.bf16.msra.mxu0 0
        %437 = vmatprep.subr.bf16.mxu0 0
        %438 = vmatpush1.bf16.msra.mxu0 0
        %439 = vmatprep.subr.bf16.mxu0 0
        %440 = vmatpush1.bf16.msra.mxu0 0
        %441 = vmatprep.subr.bf16.mxu0 0
        %442 = vmatpush1.bf16.msra.mxu0 0
        %443 = vmatprep.subr.bf16.mxu0 0
        %444 = vmatpush1.bf16.msra.mxu0 0
        %445 = vmatprep.subr.bf16.mxu0 0
        %446 = vmatpush1.bf16.msra.mxu0 0
        %447 = vmatprep.subr.bf16.mxu0 0
        %448 = vmatpush1.bf16.msra.mxu0 0
        %449 = vmatprep.subr.bf16.mxu0 0
        %450 = vmatpush1.bf16.msra.mxu0 0
        %451 = vmatprep.subr.bf16.mxu0 0
        %452 = vmatpush1.bf16.msra.mxu0 0
        %453 = vmatprep.subr.bf16.mxu0 0
        %454 = vmatpush1.bf16.msra.mxu0 0
        %455 = vmatprep.subr.bf16.mxu0 0
        %456 = vmatpush1.bf16.msra.mxu0 0
        %457 = vmatprep.subr.bf16.mxu0 0
        %458 = vmatpush1.bf16.msra.mxu0 0
        %459 = vmatprep.subr.bf16.mxu0 0
        %460 = vmatpush1.bf16.msra.mxu0 0
        %461 = vmatprep.mubr.bf16.mxu0 0
        %462 = vmatmul.mubr.bf16.gmra.mrb[0].mxu0 %v424
        %v463 = vpop.f32.mrb[0].mxu0
        %v464 = vadd.f32 0.0, %v463
        %v465 = vpop.f32.mrb[0].mxu0
        %v466 = vpop.f32.mrb[0].mxu0
        %v467 = vpop.f32.mrb[0].mxu0
        %468 = vdwg.mxu0
        %v469 = vadd.f32 %v418, %v464
        %s470 = scalar_lea.vmem %s1, 16
        %v471 = vld [vmem:[%s470] sm:$0xf]
        %472 = vrot.lane.b32.xlu0 %v268, 124
        %v473 = vpop.permute.xlu0 %472
        %v475 = vsel %vm275, %v471, 0
        %v478 = vsel %vm279, %v473, 0
        %480 = vmatprep.subr.bf16.mxu0 0
        %481 = vmatpush1.bf16.msra.mxu0 %v478
        %482 = vmatprep.subr.bf16.mxu0 0
        %483 = vmatpush1.bf16.msra.mxu0 0
        %484 = vmatprep.subr.bf16.mxu0 0
        %485 = vmatpush1.bf16.msra.mxu0 0
        %486 = vmatprep.subr.bf16.mxu0 0
        %487 = vmatpush1.bf16.msra.mxu0 0
        %488 = vmatprep.subr.bf16.mxu0 0
        %489 = vmatpush1.bf16.msra.mxu0 0
        %490 = vmatprep.subr.bf16.mxu0 0
        %491 = vmatpush1.bf16.msra.mxu0 0
        %492 = vmatprep.subr.bf16.mxu0 0
        %493 = vmatpush1.bf16.msra.mxu0 0
        %494 = vmatprep.subr.bf16.mxu0 0
        %495 = vmatpush1.bf16.msra.mxu0 0
        %496 = vmatprep.subr.bf16.mxu0 0
        %497 = vmatpush1.bf16.msra.mxu0 0
        %498 = vmatprep.subr.bf16.mxu0 0
        %499 = vmatpush1.bf16.msra.mxu0 0
        %500 = vmatprep.subr.bf16.mxu0 0
        %501 = vmatpush1.bf16.msra.mxu0 0
        %502 = vmatprep.subr.bf16.mxu0 0
        %503 = vmatpush1.bf16.msra.mxu0 0
        %504 = vmatprep.subr.bf16.mxu0 0
        %505 = vmatpush1.bf16.msra.mxu0 0
        %506 = vmatprep.subr.bf16.mxu0 0
        %507 = vmatpush1.bf16.msra.mxu0 0
        %508 = vmatprep.subr.bf16.mxu0 0
        %509 = vmatpush1.bf16.msra.mxu0 0
        %510 = vmatprep.subr.bf16.mxu0 0
        %511 = vmatpush1.bf16.msra.mxu0 0
        %512 = vmatprep.mubr.bf16.mxu0 0
        %513 = vmatmul.mubr.bf16.gmra.mrb[0].mxu0 %v475
        %v514 = vpop.f32.mrb[0].mxu0
        %v515 = vadd.f32 0.0, %v514
        %v516 = vpop.f32.mrb[0].mxu0
        %v517 = vpop.f32.mrb[0].mxu0
        %v518 = vpop.f32.mrb[0].mxu0
        %519 = vdwg.mxu0
        %v520 = vadd.f32 %v469, %v515
        %522 = vset.pattern.permute.xlu0 0
        %523 = vperm.xlu0 %522, %v256
        %v524 = vpop.permute.xlu0 %523
        %v526 = vadd.f32 %v520, %v524
        %vm527 = vcmp.gt.f32.partialorder %v526, 0.0
        %v528 = vmin.f32 %v526, 0.0
        %v529 = vmul.f32 %v528, 1.442695
        %v530 = vpow.pop %v529
        %v531 = vsub.f32 %v530, 1.0
        %v532 = vsel %vm527, %v526, %v531
        %v533 = vpack.c.bf16 %v532, %v532
        %535 = vrot.lane.b32.xlu0 %v533, 1
        %v536 = vpop.permute.xlu0 %535
        %v538 = vsel %vm263, 0, %v536
        %vm539 = vcmask 121856
        %v540 = vsel %vm539, %v538, 0
        %v541 = vld [vmem:[#allocation5] sm:$0xf]
        %s542 = scalar_lea.vmem [#allocation5], 4
        %v543 = vld [vmem:[%s542] sm:$0xf]
        %545 = vrot.lane.b32.xlu0 %v540, 127
        %v546 = vpop.permute.xlu0 %545
        %v548 = vsel %vm275, %v543, 0
        %v551 = vsel %vm279, %v546, 0
        %553 = vmatprep.subr.bf16.mxu0 0
        %554 = vmatpush1.bf16.msra.mxu0 %v551
        %555 = vmatprep.subr.bf16.mxu0 0
        %556 = vmatpush1.bf16.msra.mxu0 0
        %557 = vmatprep.subr.bf16.mxu0 0
        %558 = vmatpush1.bf16.msra.mxu0 0
        %559 = vmatprep.subr.bf16.mxu0 0
        %560 = vmatpush1.bf16.msra.mxu0 0
        %561 = vmatprep.subr.bf16.mxu0 0
        %562 = vmatpush1.bf16.msra.mxu0 0
        %563 = vmatprep.subr.bf16.mxu0 0
        %564 = vmatpush1.bf16.msra.mxu0 0
        %565 = vmatprep.subr.bf16.mxu0 0
        %566 = vmatpush1.bf16.msra.mxu0 0
        %567 = vmatprep.subr.bf16.mxu0 0
        %568 = vmatpush1.bf16.msra.mxu0 0
        %569 = vmatprep.subr.bf16.mxu0 0
        %570 = vmatpush1.bf16.msra.mxu0 0
        %571 = vmatprep.subr.bf16.mxu0 0
        %572 = vmatpush1.bf16.msra.mxu0 0
        %573 = vmatprep.subr.bf16.mxu0 0
        %574 = vmatpush1.bf16.msra.mxu0 0
        %575 = vmatprep.subr.bf16.mxu0 0
        %576 = vmatpush1.bf16.msra.mxu0 0
        %577 = vmatprep.subr.bf16.mxu0 0
        %578 = vmatpush1.bf16.msra.mxu0 0
        %579 = vmatprep.subr.bf16.mxu0 0
        %580 = vmatpush1.bf16.msra.mxu0 0
        %581 = vmatprep.subr.bf16.mxu0 0
        %582 = vmatpush1.bf16.msra.mxu0 0
        %583 = vmatprep.subr.bf16.mxu0 0
        %584 = vmatpush1.bf16.msra.mxu0 0
        %585 = vmatprep.mubr.bf16.mxu0 0
        %586 = vmatmul.mubr.bf16.gmra.mrb[0].mxu0 %v548
        %v587 = vpop.f32.mrb[0].mxu0
        %v588 = vadd.f32 0.0, %v587
        %v589 = vpop.f32.mrb[0].mxu0
        %v590 = vpop.f32.mrb[0].mxu0
        %v591 = vpop.f32.mrb[0].mxu0
        %592 = vdwg.mxu0
        %v594 = vsel %vm275, %v541, 0
        %v596 = vsel %vm279, %v540, 0
        %598 = vmatprep.subr.bf16.mxu0 0
        %599 = vmatpush1.bf16.msra.mxu0 %v596
        %600 = vmatprep.subr.bf16.mxu0 0
        %601 = vmatpush1.bf16.msra.mxu0 0
        %602 = vmatprep.subr.bf16.mxu0 0
        %603 = vmatpush1.bf16.msra.mxu0 0
        %604 = vmatprep.subr.bf16.mxu0 0
        %605 = vmatpush1.bf16.msra.mxu0 0
        %606 = vmatprep.subr.bf16.mxu0 0
        %607 = vmatpush1.bf16.msra.mxu0 0
        %608 = vmatprep.subr.bf16.mxu0 0
        %609 = vmatpush1.bf16.msra.mxu0 0
        %610 = vmatprep.subr.bf16.mxu0 0
        %611 = vmatpush1.bf16.msra.mxu0 0
        %612 = vmatprep.subr.bf16.mxu0 0
        %613 = vmatpush1.bf16.msra.mxu0 0
        %614 = vmatprep.subr.bf16.mxu0 0
        %615 = vmatpush1.bf16.msra.mxu0 0
        %616 = vmatprep.subr.bf16.mxu0 0
        %617 = vmatpush1.bf16.msra.mxu0 0
        %618 = vmatprep.subr.bf16.mxu0 0
        %619 = vmatpush1.bf16.msra.mxu0 0
        %620 = vmatprep.subr.bf16.mxu0 0
        %621 = vmatpush1.bf16.msra.mxu0 0
        %622 = vmatprep.subr.bf16.mxu0 0
        %623 = vmatpush1.bf16.msra.mxu0 0
        %624 = vmatprep.subr.bf16.mxu0 0
        %625 = vmatpush1.bf16.msra.mxu0 0
        %626 = vmatprep.subr.bf16.mxu0 0
        %627 = vmatpush1.bf16.msra.mxu0 0
        %628 = vmatprep.subr.bf16.mxu0 0
        %629 = vmatpush1.bf16.msra.mxu0 0
        %630 = vmatprep.mubr.bf16.mxu0 0
        %631 = vmatmul.mubr.bf16.gmra.mrb[0].mxu0 %v594
        %v632 = vpop.f32.mrb[0].mxu0
        %v633 = vadd.f32 %v588, %v632
        %v634 = vpop.f32.mrb[0].mxu0
        %v635 = vpop.f32.mrb[0].mxu0
        %v636 = vpop.f32.mrb[0].mxu0
        %637 = vdwg.mxu0
        %s638 = scalar_lea.vmem [#allocation5], 8
        %v639 = vld [vmem:[%s638] sm:$0xf]
        %640 = vrot.lane.b32.xlu0 %v540, 126
        %v641 = vpop.permute.xlu0 %640
        %v643 = vsel %vm275, %v639, 0
        %v646 = vsel %vm279, %v641, 0
        %648 = vmatprep.subr.bf16.mxu0 0
        %649 = vmatpush1.bf16.msra.mxu0 %v646
        %650 = vmatprep.subr.bf16.mxu0 0
        %651 = vmatpush1.bf16.msra.mxu0 0
        %652 = vmatprep.subr.bf16.mxu0 0
        %653 = vmatpush1.bf16.msra.mxu0 0
        %654 = vmatprep.subr.bf16.mxu0 0
        %655 = vmatpush1.bf16.msra.mxu0 0
        %656 = vmatprep.subr.bf16.mxu0 0
        %657 = vmatpush1.bf16.msra.mxu0 0
        %658 = vmatprep.subr.bf16.mxu0 0
        %659 = vmatpush1.bf16.msra.mxu0 0
        %660 = vmatprep.subr.bf16.mxu0 0
        %661 = vmatpush1.bf16.msra.mxu0 0
        %662 = vmatprep.subr.bf16.mxu0 0
        %663 = vmatpush1.bf16.msra.mxu0 0
        %664 = vmatprep.subr.bf16.mxu0 0
        %665 = vmatpush1.bf16.msra.mxu0 0
        %666 = vmatprep.subr.bf16.mxu0 0
        %667 = vmatpush1.bf16.msra.mxu0 0
        %668 = vmatprep.subr.bf16.mxu0 0
        %669 = vmatpush1.bf16.msra.mxu0 0
        %670 = vmatprep.subr.bf16.mxu0 0
        %671 = vmatpush1.bf16.msra.mxu0 0
        %672 = vmatprep.subr.bf16.mxu0 0
        %673 = vmatpush1.bf16.msra.mxu0 0
        %674 = vmatprep.subr.bf16.mxu0 0
        %675 = vmatpush1.bf16.msra.mxu0 0
        %676 = vmatprep.subr.bf16.mxu0 0
        %677 = vmatpush1.bf16.msra.mxu0 0
        %678 = vmatprep.subr.bf16.mxu0 0
        %679 = vmatpush1.bf16.msra.mxu0 0
        %680 = vmatprep.mubr.bf16.mxu0 0
        %681 = vmatmul.mubr.bf16.gmra.mrb[0].mxu0 %v643
        %v682 = vpop.f32.mrb[0].mxu0
        %v683 = vadd.f32 0.0, %v682
        %v684 = vpop.f32.mrb[0].mxu0
        %v685 = vpop.f32.mrb[0].mxu0
        %v686 = vpop.f32.mrb[0].mxu0
        %687 = vdwg.mxu0
        %v688 = vadd.f32 %v633, %v683
        %s689 = scalar_lea.vmem [#allocation5], 12
        %v690 = vld [vmem:[%s689] sm:$0xf]
        %691 = vrot.lane.b32.xlu0 %v540, 125
        %v692 = vpop.permute.xlu0 %691
        %v694 = vsel %vm275, %v690, 0
        %v697 = vsel %vm279, %v692, 0
        %699 = vmatprep.subr.bf16.mxu0 0
        %700 = vmatpush1.bf16.msra.mxu0 %v697
        %701 = vmatprep.subr.bf16.mxu0 0
        %702 = vmatpush1.bf16.msra.mxu0 0
        %703 = vmatprep.subr.bf16.mxu0 0
        %704 = vmatpush1.bf16.msra.mxu0 0
        %705 = vmatprep.subr.bf16.mxu0 0
        %706 = vmatpush1.bf16.msra.mxu0 0
        %707 = vmatprep.subr.bf16.mxu0 0
        %708 = vmatpush1.bf16.msra.mxu0 0
        %709 = vmatprep.subr.bf16.mxu0 0
        %710 = vmatpush1.bf16.msra.mxu0 0
        %711 = vmatprep.subr.bf16.mxu0 0
        %712 = vmatpush1.bf16.msra.mxu0 0
        %713 = vmatprep.subr.bf16.mxu0 0
        %714 = vmatpush1.bf16.msra.mxu0 0
        %715 = vmatprep.subr.bf16.mxu0 0
        %716 = vmatpush1.bf16.msra.mxu0 0
        %717 = vmatprep.subr.bf16.mxu0 0
        %718 = vmatpush1.bf16.msra.mxu0 0
        %719 = vmatprep.subr.bf16.mxu0 0
        %720 = vmatpush1.bf16.msra.mxu0 0
        %721 = vmatprep.subr.bf16.mxu0 0
        %722 = vmatpush1.bf16.msra.mxu0 0
        %723 = vmatprep.subr.bf16.mxu0 0
        %724 = vmatpush1.bf16.msra.mxu0 0
        %725 = vmatprep.subr.bf16.mxu0 0
        %726 = vmatpush1.bf16.msra.mxu0 0
        %727 = vmatprep.subr.bf16.mxu0 0
        %728 = vmatpush1.bf16.msra.mxu0 0
        %729 = vmatprep.subr.bf16.mxu0 0
        %730 = vmatpush1.bf16.msra.mxu0 0
        %731 = vmatprep.mubr.bf16.mxu0 0
        %732 = vmatmul.mubr.bf16.gmra.mrb[0].mxu0 %v694
        %v733 = vpop.f32.mrb[0].mxu0
        %v734 = vadd.f32 0.0, %v733
        %v735 = vpop.f32.mrb[0].mxu0
        %v736 = vpop.f32.mrb[0].mxu0
        %v737 = vpop.f32.mrb[0].mxu0
        %738 = vdwg.mxu0
        %v739 = vadd.f32 %v688, %v734
        %s740 = scalar_lea.vmem [#allocation5], 16
        %v741 = vld [vmem:[%s740] sm:$0xf]
        %742 = vrot.lane.b32.xlu0 %v540, 124
        %v743 = vpop.permute.xlu0 %742
        %v745 = vsel %vm275, %v741, 0
        %v748 = vsel %vm279, %v743, 0
        %750 = vmatprep.subr.bf16.mxu0 0
        %751 = vmatpush1.bf16.msra.mxu0 %v748
        %752 = vmatprep.subr.bf16.mxu0 0
        %753 = vmatpush1.bf16.msra.mxu0 0
        %754 = vmatprep.subr.bf16.mxu0 0
        %755 = vmatpush1.bf16.msra.mxu0 0
        %756 = vmatprep.subr.bf16.mxu0 0
        %757 = vmatpush1.bf16.msra.mxu0 0
        %758 = vmatprep.subr.bf16.mxu0 0
        %759 = vmatpush1.bf16.msra.mxu0 0
        %760 = vmatprep.subr.bf16.mxu0 0
        %761 = vmatpush1.bf16.msra.mxu0 0
        %762 = vmatprep.subr.bf16.mxu0 0
        %763 = vmatpush1.bf16.msra.mxu0 0
        %764 = vmatprep.subr.bf16.mxu0 0
        %765 = vmatpush1.bf16.msra.mxu0 0
        %766 = vmatprep.subr.bf16.mxu0 0
        %767 = vmatpush1.bf16.msra.mxu0 0
        %768 = vmatprep.subr.bf16.mxu0 0
        %769 = vmatpush1.bf16.msra.mxu0 0
        %770 = vmatprep.subr.bf16.mxu0 0
        %771 = vmatpush1.bf16.msra.mxu0 0
        %772 = vmatprep.subr.bf16.mxu0 0
        %773 = vmatpush1.bf16.msra.mxu0 0
        %774 = vmatprep.subr.bf16.mxu0 0
        %775 = vmatpush1.bf16.msra.mxu0 0
        %776 = vmatprep.subr.bf16.mxu0 0
        %777 = vmatpush1.bf16.msra.mxu0 0
        %778 = vmatprep.subr.bf16.mxu0 0
        %779 = vmatpush1.bf16.msra.mxu0 0
        %780 = vmatprep.subr.bf16.mxu0 0
        %781 = vmatpush1.bf16.msra.mxu0 0
        %782 = vmatprep.mubr.bf16.mxu0 0
        %783 = vmatmul.mubr.bf16.gmra.mrb[0].mxu0 %v745
        %v784 = vpop.f32.mrb[0].mxu0
        %v785 = vadd.f32 0.0, %v784
        %v786 = vpop.f32.mrb[0].mxu0
        %v787 = vpop.f32.mrb[0].mxu0
        %v788 = vpop.f32.mrb[0].mxu0
        %789 = vdwg.mxu0
        %v790 = vadd.f32 %v739, %v785
        %792 = vset.pattern.permute.xlu0 0
        %793 = vperm.xlu0 %792, %v257
        %v794 = vpop.permute.xlu0 %793
        %v796 = vadd.f32 %v790, %v794
        %v797 = vadd.f32 %v258, %v796
        %vm798 = vcmp.gt.f32.partialorder %v797, 0.0
        %v799 = vmin.f32 %v797, 0.0
        %v800 = vmul.f32 %v799, 1.442695
        %v801 = vpow.pop %v800
        %v802 = vsub.f32 %v801, 1.0
        %v803 = vsel %vm798, %v797, %v802
        %vm804 = vcmask 97280
        %805 = vst.msk [vmem:[%s254] sm:$0xff] %vm804, %v803
        %s806 = sand.u32 %s141, 1
        %s807 = scalar_lea.sflag [#allocation4], %s806
        %s808 = sand.u32 %s141, 1
        %s809 = smul.addr %s808, 8
        %s810 = scalar_lea.vmem [#allocation7], %s809
        // Predicated region
        $region49: #{tpu_custom_call.1} parent=39 // pred_check
          %p811 = pneg %p151
        $region50: #{tpu_custom_call.1} parent=39 // pred_check_branch
          %813 = sbr.rel (%p811) target = $region52
        $region51: #{tpu_custom_call.1} parent=39 // pred_region
          %s815 = ssub.s32 128, 128
          %816 = vsyncadd %s807, %s815
          %s817 = smul.addr %s23, 128
          %s818 = scalar_lea.hbm %s5, %s817
          %s820 = sshll.u32 %s810, 4
          %s821 = int_to_ptr.vmem [resolvable:$true] %s820
          %823 = dma.vmem_to_hbm [thread:$0]  %s821, 128, %s818, %s807
        $region52: #{tpu_custom_call.1} parent=39 // pred_fallthru
          _
      $region40: #{tpu_custom_call.1} parent=5 // pred_fallthru
        _
      %p824 = scmp.le.s32.totalorder 2, %s18
      // Predicated region
      $region53: #{tpu_custom_call.1} parent=5 // pred_check
        %p825 = pneg %p824
      $region54: #{tpu_custom_call.1} parent=5 // pred_check_branch
        %827 = sbr.rel (%p825) target = $region56
      $region55: #{tpu_custom_call.1} parent=5 // pred_region
        %s828 = ssub.s32 %s18, 2
        // Predicated region
        $region57: #{tpu_custom_call.1} parent=55 // pred_check
          %p829 = pneg %p157
        $region58: #{tpu_custom_call.1} parent=55 // pred_check_branch
          %831 = sbr.rel (%p829) target = $region60
        $region59: #{tpu_custom_call.1} parent=55 // pred_region
          %s832 = sand.u32 %s142, 1
          %s833 = scalar_lea.sflag [#allocation4], %s832
          %s834 = sand.u32 %s142, 1
          %s835 = smul.addr %s834, 8
          %s836 = scalar_lea.vmem [#allocation7], %s835
          %837 = dma.done %s833, 128
        $region60: #{tpu_custom_call.1} parent=55 // pred_fallthru
          _
      $region56: #{tpu_custom_call.1} parent=5 // pred_fallthru
        _
    $region6: #{tpu_custom_call.1} parent=1 // loop_footer
      %s22 = sadd.s32 1, %s18
    $region7: #{tpu_custom_call.1} parent=1 // loop_footer_branch
      %17 = sbr.rel target = $region3
    $region8: #{tpu_custom_call.1} parent=1 // loop_exit
      _
    %838 = vsyncpa [#allocation3], 1
    %s839 = scalar_lea.sflag [#allocation3], 1
    %840 = vsyncpa %s839, 1
    %841 = vsyncpa [#allocation6], 1
    %842 = vsyncpa [#allocation4], 1
    %s843 = scalar_lea.sflag [#allocation4], 1
    %844 = vsyncpa %s843, 1

</llo_original>
